<compile_context>
chip_gen: v5e
topology: v5e:2x2
jax: 0.10.0
libtpu: 0.0.40
codegen_flags: <defaults>
</compile_context>

<pallas_src>
import jax
import jax.numpy as jnp
from jax.experimental import pallas as pl
from jax.experimental.pallas import tpu as pltpu

# Real model dims (from the PyTorch module: Linear(3,2) -> Linear(2,3) -> Linear(3,2))
D_IN, D_H1, D_H2, D_OUT = 3, 2, 3, 2

LANE = 128            # TPU lane width; batch samples map onto lanes
SUB = 8               # sublane granularity; batch-row tiles must be multiples of 8
DEFAULT_TILE_S = 512  # sublane rows per grid step -> 512 * 128 = 65536 samples / step


def _mlp_kernel(x_ref, w1_ref, b1_ref, w2_ref, b2_ref, w3_ref, b3_ref, o_ref):
    # x_ref block: (3, TILE_S, 128); each feature plane is a lane-dense (TILE_S, 128).
    x0 = x_ref[0]
    x1 = x_ref[1]
    x2 = x_ref[2]

    # fc1: Linear(3 -> 2) + ReLU.  Weights are PyTorch-layout (out, in) scalars in SMEM.
    h10 = jnp.maximum(
        w1_ref[0, 0] * x0 + w1_ref[0, 1] * x1 + w1_ref[0, 2] * x2 + b1_ref[0], 0.0)
    h11 = jnp.maximum(
        w1_ref[1, 0] * x0 + w1_ref[1, 1] * x1 + w1_ref[1, 2] * x2 + b1_ref[1], 0.0)

    # fc2: Linear(2 -> 3) + ReLU
    h20 = jnp.maximum(w2_ref[0, 0] * h10 + w2_ref[0, 1] * h11 + b2_ref[0], 0.0)
    h21 = jnp.maximum(w2_ref[1, 0] * h10 + w2_ref[1, 1] * h11 + b2_ref[1], 0.0)
    h22 = jnp.maximum(w2_ref[2, 0] * h10 + w2_ref[2, 1] * h11 + b2_ref[2], 0.0)

    # fc3: Linear(3 -> 2), logits (no activation)
    o_ref[0] = w3_ref[0, 0] * h20 + w3_ref[0, 1] * h21 + w3_ref[0, 2] * h22 + b3_ref[0]
    o_ref[1] = w3_ref[1, 0] * h20 + w3_ref[1, 1] * h21 + w3_ref[1, 2] * h22 + b3_ref[1]


def bike_classifier_forward(x, params, *, tile_s=DEFAULT_TILE_S):
    """x: (B, 3) -> logits (B, 2), float32.  params in PyTorch nn.Linear layout."""
    w1, b1, w2, b2, w3, b3 = params
    B = x.shape[0]

    # Batch laid out over (sublane, lane): sample b -> (b // 128, b % 128).
    rows = pl.cdiv(B, LANE)                    # 128-wide rows needed
    s_needed = SUB * pl.cdiv(rows, SUB)        # round rows up to a multiple of 8
    tile_s = min(tile_s, s_needed)             # both are multiples of 8
    sp = tile_s * pl.cdiv(s_needed, tile_s)    # total sublane rows (multiple of tile_s)
    bp = sp * LANE                             # padded batch size
    num_tiles = sp // tile_s

    # (B, 3) -> (3, B) -> zero-pad batch -> (3, Sp, 128).  Zero padding is inert:
    # padded samples never mix with real ones and are sliced off at the end.
    xt = jnp.transpose(x.astype(jnp.float32))
    xt = jnp.pad(xt, ((0, 0), (0, bp - B))).reshape(D_IN, sp, LANE)

    smem = pl.BlockSpec(memory_space=pltpu.MemorySpace.SMEM)

    out_p = pl.pallas_call(
        _mlp_kernel,
        out_shape=jax.ShapeDtypeStruct((D_OUT, sp, LANE), jnp.float32),
        grid=(num_tiles,),
        in_specs=[
            pl.BlockSpec((D_IN, tile_s, LANE), lambda i: (0, i, 0)),   # x
            smem, smem,                                                # w1, b1
            smem, smem,                                                # w2, b2
            smem, smem,                                                # w3, b3
        ],
        out_specs=pl.BlockSpec((D_OUT, tile_s, LANE), lambda i: (0, i, 0)),
        compiler_params=pltpu.CompilerParams(
            dimension_semantics=("parallel",)),   # megacore-shard the batch axis
    )(xt, w1, b1, w2, b2, w3, b3)

    # (2, Sp, 128) -> (2, Bp) -> (B, 2)
    return out_p.reshape(D_OUT, bp)[:, :B].T


def init_params(key):
    """Deterministic init mirroring PyTorch's default nn.Linear init
    (uniform in +-1/sqrt(fan_in)).  Weights stored PyTorch-style as (out, in)."""
    def linear(k, fan_in, fan_out):
        kw, kb = jax.random.split(k)
        bound = 1.0 / (fan_in ** 0.5)
        w = jax.random.uniform(kw, (fan_out, fan_in), jnp.float32, -bound, bound)
        b = jax.random.uniform(kb, (fan_out,), jnp.float32, -bound, bound)
        return w, b

    k1, k2, k3 = jax.random.split(key, 3)
    w1, b1 = linear(k1, D_IN, D_H1)
    w2, b2 = linear(k2, D_H1, D_H2)
    w3, b3 = linear(k3, D_H2, D_OUT)
    return (w1, b1, w2, b2, w3, b3)


def reference_forward(x, params):
    """Pure-JAX reference of the PyTorch forward (PyTorch weight layout)."""
    w1, b1, w2, b2, w3, b3 = params
    hi = jax.lax.Precision.HIGHEST
    h = jnp.maximum(jnp.dot(x, w1.T, precision=hi) + b1, 0.0)
    h = jnp.maximum(jnp.dot(h, w2.T, precision=hi) + b2, 0.0)
    return jnp.dot(h, w3.T, precision=hi) + b3


if __name__ == "__main__":
    key = jax.random.PRNGKey(0)
    kp, kx = jax.random.split(key)
    params = init_params(kp)

    B = 2
    x = jax.random.normal(kx, (B, D_IN), jnp.float32)

    fwd = jax.jit(bike_classifier_forward)
    out = fwd(x, params)
    out = jax.block_until_ready(out)

    ref = reference_forward(x, params)
    assert out.shape == (B, D_OUT), out.shape
    assert jnp.allclose(out, ref, atol=1e-5, rtol=1e-5), (out, ref)

    print("KERNEL_OK")
</pallas_src>

<mosaic_0001>
module attributes {stable_mosaic.version = 11 : i64} {
  func.func @_mlp_kernel(%arg0: i32, %arg1: memref<3x8x128xf32, #tpu.memory_space<vmem>>, %arg2: memref<2x3xf32, #tpu.memory_space<smem>>, %arg3: memref<2xf32, #tpu.memory_space<smem>>, %arg4: memref<3x2xf32, #tpu.memory_space<smem>>, %arg5: memref<3xf32, #tpu.memory_space<smem>>, %arg6: memref<2x3xf32, #tpu.memory_space<smem>>, %arg7: memref<2xf32, #tpu.memory_space<smem>>, %arg8: memref<2x8x128xf32, #tpu.memory_space<vmem>>) attributes {dimension_semantics = [#tpu.dimension_semantics<parallel>], iteration_bounds = array<i64: 1>, scalar_prefetch = 0 : i64, scratch_operands = 0 : i64, tpu.core_type = #tpu.core_type<tc>, window_params = [{transform_indices = @transform_0, window_bounds = array<i64: 3, 8, 128>}, {transform_indices = @transform_1, window_bounds = array<i64: 2, 3>}, {transform_indices = @transform_2, window_bounds = array<i64: 2>}, {transform_indices = @transform_3, window_bounds = array<i64: 3, 2>}, {transform_indices = @transform_4, window_bounds = array<i64: 3>}, {transform_indices = @transform_5, window_bounds = array<i64: 2, 3>}, {transform_indices = @transform_6, window_bounds = array<i64: 2>}, {transform_indices = @transform_7, window_bounds = array<i64: 2, 8, 128>}]} {
    %c0 = arith.constant 0 : index
    %c0_0 = arith.constant 0 : index
    %c0_1 = arith.constant 0 : index
    %0 = vector.load %arg1[%c0, %c0_0, %c0_1] : memref<3x8x128xf32, #tpu.memory_space<vmem>>, vector<1x8x128xf32>
    %1 = vector.shape_cast %0 : vector<1x8x128xf32> to vector<8x128xf32>
    %c1 = arith.constant 1 : index
    %c0_2 = arith.constant 0 : index
    %c0_3 = arith.constant 0 : index
    %2 = vector.load %arg1[%c1, %c0_2, %c0_3] : memref<3x8x128xf32, #tpu.memory_space<vmem>>, vector<1x8x128xf32>
    %3 = vector.shape_cast %2 : vector<1x8x128xf32> to vector<8x128xf32>
    %c2 = arith.constant 2 : index
    %c0_4 = arith.constant 0 : index
    %c0_5 = arith.constant 0 : index
    %4 = vector.load %arg1[%c2, %c0_4, %c0_5] : memref<3x8x128xf32, #tpu.memory_space<vmem>>, vector<1x8x128xf32>
    %5 = vector.shape_cast %4 : vector<1x8x128xf32> to vector<8x128xf32>
    %c0_6 = arith.constant 0 : index
    %c0_7 = arith.constant 0 : index
    %6 = memref.load %arg2[%c0_6, %c0_7] : memref<2x3xf32, #tpu.memory_space<smem>>
    %7 = vector.broadcast %6 : f32 to vector<8x128xf32>
    %8 = arith.mulf %7, %1 : vector<8x128xf32>
    %c0_8 = arith.constant 0 : index
    %c1_9 = arith.constant 1 : index
    %9 = memref.load %arg2[%c0_8, %c1_9] : memref<2x3xf32, #tpu.memory_space<smem>>
    %10 = vector.broadcast %9 : f32 to vector<8x128xf32>
    %11 = arith.mulf %10, %3 : vector<8x128xf32>
    %12 = arith.addf %8, %11 : vector<8x128xf32>
    %c0_10 = arith.constant 0 : index
    %c2_11 = arith.constant 2 : index
    %13 = memref.load %arg2[%c0_10, %c2_11] : memref<2x3xf32, #tpu.memory_space<smem>>
    %14 = vector.broadcast %13 : f32 to vector<8x128xf32>
    %15 = arith.mulf %14, %5 : vector<8x128xf32>
    %16 = arith.addf %12, %15 : vector<8x128xf32>
    %c0_12 = arith.constant 0 : index
    %17 = memref.load %arg3[%c0_12] : memref<2xf32, #tpu.memory_space<smem>>
    %18 = vector.broadcast %17 : f32 to vector<8x128xf32>
    %19 = arith.addf %16, %18 : vector<8x128xf32>
    %cst = arith.constant 0.000000e+00 : f32
    %20 = vector.broadcast %cst : f32 to vector<8x128xf32>
    %21 = arith.maximumf %19, %20 : vector<8x128xf32>
    %c1_13 = arith.constant 1 : index
    %c0_14 = arith.constant 0 : index
    %22 = memref.load %arg2[%c1_13, %c0_14] : memref<2x3xf32, #tpu.memory_space<smem>>
    %23 = vector.broadcast %22 : f32 to vector<8x128xf32>
    %24 = arith.mulf %23, %1 : vector<8x128xf32>
    %c1_15 = arith.constant 1 : index
    %c1_16 = arith.constant 1 : index
    %25 = memref.load %arg2[%c1_15, %c1_16] : memref<2x3xf32, #tpu.memory_space<smem>>
    %26 = vector.broadcast %25 : f32 to vector<8x128xf32>
    %27 = arith.mulf %26, %3 : vector<8x128xf32>
    %28 = arith.addf %24, %27 : vector<8x128xf32>
    %c1_17 = arith.constant 1 : index
    %c2_18 = arith.constant 2 : index
    %29 = memref.load %arg2[%c1_17, %c2_18] : memref<2x3xf32, #tpu.memory_space<smem>>
    %30 = vector.broadcast %29 : f32 to vector<8x128xf32>
    %31 = arith.mulf %30, %5 : vector<8x128xf32>
    %32 = arith.addf %28, %31 : vector<8x128xf32>
    %c1_19 = arith.constant 1 : index
    %33 = memref.load %arg3[%c1_19] : memref<2xf32, #tpu.memory_space<smem>>
    %34 = vector.broadcast %33 : f32 to vector<8x128xf32>
    %35 = arith.addf %32, %34 : vector<8x128xf32>
    %cst_20 = arith.constant 0.000000e+00 : f32
    %36 = vector.broadcast %cst_20 : f32 to vector<8x128xf32>
    %37 = arith.maximumf %35, %36 : vector<8x128xf32>
    %c0_21 = arith.constant 0 : index
    %c0_22 = arith.constant 0 : index
    %38 = memref.load %arg4[%c0_21, %c0_22] : memref<3x2xf32, #tpu.memory_space<smem>>
    %39 = vector.broadcast %38 : f32 to vector<8x128xf32>
    %40 = arith.mulf %39, %21 : vector<8x128xf32>
    %c0_23 = arith.constant 0 : index
    %c1_24 = arith.constant 1 : index
    %41 = memref.load %arg4[%c0_23, %c1_24] : memref<3x2xf32, #tpu.memory_space<smem>>
    %42 = vector.broadcast %41 : f32 to vector<8x128xf32>
    %43 = arith.mulf %42, %37 : vector<8x128xf32>
    %44 = arith.addf %40, %43 : vector<8x128xf32>
    %c0_25 = arith.constant 0 : index
    %45 = memref.load %arg5[%c0_25] : memref<3xf32, #tpu.memory_space<smem>>
    %46 = vector.broadcast %45 : f32 to vector<8x128xf32>
    %47 = arith.addf %44, %46 : vector<8x128xf32>
    %cst_26 = arith.constant 0.000000e+00 : f32
    %48 = vector.broadcast %cst_26 : f32 to vector<8x128xf32>
    %49 = arith.maximumf %47, %48 : vector<8x128xf32>
    %c1_27 = arith.constant 1 : index
    %c0_28 = arith.constant 0 : index
    %50 = memref.load %arg4[%c1_27, %c0_28] : memref<3x2xf32, #tpu.memory_space<smem>>
    %51 = vector.broadcast %50 : f32 to vector<8x128xf32>
    %52 = arith.mulf %51, %21 : vector<8x128xf32>
    %c1_29 = arith.constant 1 : index
    %c1_30 = arith.constant 1 : index
    %53 = memref.load %arg4[%c1_29, %c1_30] : memref<3x2xf32, #tpu.memory_space<smem>>
    %54 = vector.broadcast %53 : f32 to vector<8x128xf32>
    %55 = arith.mulf %54, %37 : vector<8x128xf32>
    %56 = arith.addf %52, %55 : vector<8x128xf32>
    %c1_31 = arith.constant 1 : index
    %57 = memref.load %arg5[%c1_31] : memref<3xf32, #tpu.memory_space<smem>>
    %58 = vector.broadcast %57 : f32 to vector<8x128xf32>
    %59 = arith.addf %56, %58 : vector<8x128xf32>
    %cst_32 = arith.constant 0.000000e+00 : f32
    %60 = vector.broadcast %cst_32 : f32 to vector<8x128xf32>
    %61 = arith.maximumf %59, %60 : vector<8x128xf32>
    %c2_33 = arith.constant 2 : index
    %c0_34 = arith.constant 0 : index
    %62 = memref.load %arg4[%c2_33, %c0_34] : memref<3x2xf32, #tpu.memory_space<smem>>
    %63 = vector.broadcast %62 : f32 to vector<8x128xf32>
    %64 = arith.mulf %63, %21 : vector<8x128xf32>
    %c2_35 = arith.constant 2 : index
    %c1_36 = arith.constant 1 : index
    %65 = memref.load %arg4[%c2_35, %c1_36] : memref<3x2xf32, #tpu.memory_space<smem>>
    %66 = vector.broadcast %65 : f32 to vector<8x128xf32>
    %67 = arith.mulf %66, %37 : vector<8x128xf32>
    %68 = arith.addf %64, %67 : vector<8x128xf32>
    %c2_37 = arith.constant 2 : index
    %69 = memref.load %arg5[%c2_37] : memref<3xf32, #tpu.memory_space<smem>>
    %70 = vector.broadcast %69 : f32 to vector<8x128xf32>
    %71 = arith.addf %68, %70 : vector<8x128xf32>
    %cst_38 = arith.constant 0.000000e+00 : f32
    %72 = vector.broadcast %cst_38 : f32 to vector<8x128xf32>
    %73 = arith.maximumf %71, %72 : vector<8x128xf32>
    %c0_39 = arith.constant 0 : index
    %c0_40 = arith.constant 0 : index
    %74 = memref.load %arg6[%c0_39, %c0_40] : memref<2x3xf32, #tpu.memory_space<smem>>
    %75 = vector.broadcast %74 : f32 to vector<8x128xf32>
    %76 = arith.mulf %75, %49 : vector<8x128xf32>
    %c0_41 = arith.constant 0 : index
    %c1_42 = arith.constant 1 : index
    %77 = memref.load %arg6[%c0_41, %c1_42] : memref<2x3xf32, #tpu.memory_space<smem>>
    %78 = vector.broadcast %77 : f32 to vector<8x128xf32>
    %79 = arith.mulf %78, %61 : vector<8x128xf32>
    %80 = arith.addf %76, %79 : vector<8x128xf32>
    %c0_43 = arith.constant 0 : index
    %c2_44 = arith.constant 2 : index
    %81 = memref.load %arg6[%c0_43, %c2_44] : memref<2x3xf32, #tpu.memory_space<smem>>
    %82 = vector.broadcast %81 : f32 to vector<8x128xf32>
    %83 = arith.mulf %82, %73 : vector<8x128xf32>
    %84 = arith.addf %80, %83 : vector<8x128xf32>
    %c0_45 = arith.constant 0 : index
    %85 = memref.load %arg7[%c0_45] : memref<2xf32, #tpu.memory_space<smem>>
    %86 = vector.broadcast %85 : f32 to vector<8x128xf32>
    %87 = arith.addf %84, %86 : vector<8x128xf32>
    %c0_46 = arith.constant 0 : index
    %c0_47 = arith.constant 0 : index
    %c0_48 = arith.constant 0 : index
    %88 = vector.load %arg8[%c0_46, %c0_47, %c0_48] : memref<2x8x128xf32, #tpu.memory_space<vmem>>, vector<1x8x128xf32>
    %89 = vector.shape_cast %88 : vector<1x8x128xf32> to vector<8x128xf32>
    %90 = vector.shape_cast %87 : vector<8x128xf32> to vector<1x8x128xf32>
    tpu.vector_store %arg8[%c0_46, %c0_47, %c0_48], %90 {strides = array<i32>} : memref<2x8x128xf32, #tpu.memory_space<vmem>>, vector<1x8x128xf32>,
    %c1_49 = arith.constant 1 : index
    %c0_50 = arith.constant 0 : index
    %91 = memref.load %arg6[%c1_49, %c0_50] : memref<2x3xf32, #tpu.memory_space<smem>>
    %92 = vector.broadcast %91 : f32 to vector<8x128xf32>
    %93 = arith.mulf %92, %49 : vector<8x128xf32>
    %c1_51 = arith.constant 1 : index
    %c1_52 = arith.constant 1 : index
    %94 = memref.load %arg6[%c1_51, %c1_52] : memref<2x3xf32, #tpu.memory_space<smem>>
    %95 = vector.broadcast %94 : f32 to vector<8x128xf32>
    %96 = arith.mulf %95, %61 : vector<8x128xf32>
    %97 = arith.addf %93, %96 : vector<8x128xf32>
    %c1_53 = arith.constant 1 : index
    %c2_54 = arith.constant 2 : index
    %98 = memref.load %arg6[%c1_53, %c2_54] : memref<2x3xf32, #tpu.memory_space<smem>>
    %99 = vector.broadcast %98 : f32 to vector<8x128xf32>
    %100 = arith.mulf %99, %73 : vector<8x128xf32>
    %101 = arith.addf %97, %100 : vector<8x128xf32>
    %c1_55 = arith.constant 1 : index
    %102 = memref.load %arg7[%c1_55] : memref<2xf32, #tpu.memory_space<smem>>
    %103 = vector.broadcast %102 : f32 to vector<8x128xf32>
    %104 = arith.addf %101, %103 : vector<8x128xf32>
    %c1_56 = arith.constant 1 : index
    %c0_57 = arith.constant 0 : index
    %c0_58 = arith.constant 0 : index
    %105 = vector.load %arg8[%c1_56, %c0_57, %c0_58] : memref<2x8x128xf32, #tpu.memory_space<vmem>>, vector<1x8x128xf32>
    %106 = vector.shape_cast %105 : vector<1x8x128xf32> to vector<8x128xf32>
    %107 = vector.shape_cast %104 : vector<8x128xf32> to vector<1x8x128xf32>
    tpu.vector_store %arg8[%c1_56, %c0_57, %c0_58], %107 {strides = array<i32>} : memref<2x8x128xf32, #tpu.memory_space<vmem>>, vector<1x8x128xf32>,
    return
  }
  func.func @transform_0(%arg0: i32) -> (i32, i32, i32) {
    %c0_i32 = arith.constant 0 : i32
    %c0_i32_0 = arith.constant 0 : i32
    %c0_i32_1 = arith.constant 0 : i32
    return %c0_i32, %arg0, %c0_i32_0 : i32, i32, i32
  }
  func.func @transform_1(%arg0: i32) -> (i32, i32) {
    %c0_i32 = arith.constant 0 : i32
    %c0_i32_0 = arith.constant 0 : i32
    %c0_i32_1 = arith.constant 0 : i32
    return %c0_i32, %c0_i32_0 : i32, i32
  }
  func.func @transform_2(%arg0: i32) -> i32 {
    %c0_i32 = arith.constant 0 : i32
    %c0_i32_0 = arith.constant 0 : i32
    return %c0_i32 : i32
  }
  func.func @transform_3(%arg0: i32) -> (i32, i32) {
    %c0_i32 = arith.constant 0 : i32
    %c0_i32_0 = arith.constant 0 : i32
    %c0_i32_1 = arith.constant 0 : i32
    return %c0_i32, %c0_i32_0 : i32, i32
  }
  func.func @transform_4(%arg0: i32) -> i32 {
    %c0_i32 = arith.constant 0 : i32
    %c0_i32_0 = arith.constant 0 : i32
    return %c0_i32 : i32
  }
  func.func @transform_5(%arg0: i32) -> (i32, i32) {
    %c0_i32 = arith.constant 0 : i32
    %c0_i32_0 = arith.constant 0 : i32
    %c0_i32_1 = arith.constant 0 : i32
    return %c0_i32, %c0_i32_0 : i32, i32
  }
  func.func @transform_6(%arg0: i32) -> i32 {
    %c0_i32 = arith.constant 0 : i32
    %c0_i32_0 = arith.constant 0 : i32
    return %c0_i32 : i32
  }
  func.func @transform_7(%arg0: i32) -> (i32, i32, i32) {
    %c0_i32 = arith.constant 0 : i32
    %c0_i32_0 = arith.constant 0 : i32
    %c0_i32_1 = arith.constant 0 : i32
    return %c0_i32, %arg0, %c0_i32_0 : i32, i32, i32
  }
}

</mosaic_0001>

<llo_original>
// kernel: bike_classifier_forward.1
$region0: #{bike_classifier_forward.1}
  #allocation0 [shape = 'u32[]', space=smem, size = 0x4, offset = 0x4, fixed_abs, tag = 'smem constant byte address 0x4 - core index']
  #allocation1 [shape = 'u32[72,128]{1,0:T(1,128)}', space=vmem, size = 0x9000, scoped, tag = 'internal scratch']
  %s0 = inlined_call_operand.vmem [shape: f32[3,8,128], index: 0, kind: input, shape index: {}]
  %s1 = inlined_call_operand.vmem [shape: f32[2,3], index: 1, kind: input, shape index: {}]
  %s2 = inlined_call_operand.vmem [shape: f32[2], index: 2, kind: input, shape index: {}]
  %s3 = inlined_call_operand.vmem [shape: f32[3,2], index: 3, kind: input, shape index: {}]
  %s4 = inlined_call_operand.vmem [shape: f32[3], index: 4, kind: input, shape index: {}]
  %s5 = inlined_call_operand.vmem [shape: f32[2,3], index: 5, kind: input, shape index: {}]
  %s6 = inlined_call_operand.vmem [shape: f32[2], index: 6, kind: input, shape index: {}]
  %s7 = inlined_call_operand.vmem [shape: f32[2,8,128], index: 7, kind: output, shape index: {}]
  %s8 = sld [smem:[#allocation0]]
  $region62: #{bike_classifier_forward.1} parent=0
    _
  %s10 = ssub.s32 1, %s8
  %s11 = scalar_select 0, %s10, %s8
  $region1: #{bike_classifier_forward.1} parent=0
    #allocation2 [shape = 'u8[1024]{0}', space=smem, size = 0x400, scoped, tag = 'input window, operand 1, single buffered']
    #allocation3 [shape = 's32[1]{0}', space=sflag, size = 0x4, scoped, tag = 'scoped memory for bike_classifier_forward.1']
    #allocation4 [shape = 'u8[512]{0}', space=smem, size = 0x200, scoped, tag = 'input window, operand 2, single buffered']
    #allocation5 [shape = 's32[1]{0}', space=sflag, size = 0x4, scoped, tag = 'scoped memory for bike_classifier_forward.1']
    #allocation6 [shape = 'u8[2048]{0}', space=smem, size = 0x800, scoped, tag = 'input window, operand 3, single buffered']
    #allocation7 [shape = 'u8[512]{0}', space=smem, size = 0x200, scoped, tag = 'input window, operand 4, single buffered']
    #allocation8 [shape = 's32[1]{0}', space=sflag, size = 0x4, scoped, tag = 'scoped memory for bike_classifier_forward.1']
    #allocation9 [shape = 'u8[1024]{0}', space=smem, size = 0x400, scoped, tag = 'input window, operand 5, single buffered']
    #allocation10 [shape = 'u8[512]{0}', space=smem, size = 0x200, scoped, tag = 'input window, operand 6, single buffered']
    #allocation11 [shape = 's32[1]{0}', space=sflag, size = 0x4, scoped, tag = 'scoped memory for bike_classifier_forward.1']
    %12 = vsyncpa [#allocation3], 0
    %13 = vsyncpa [#allocation5], 0
    %14 = vsyncpa [#allocation8], 0
    %15 = vsyncpa [#allocation11], 0
    // Predicated region
    $region2: #{bike_classifier_forward.1} parent=1 // pred_check
      _
    $region3: #{bike_classifier_forward.1} parent=1 // pred_check_branch
      %17 = sbr.rel (0) target = $region5
    $region4: #{bike_classifier_forward.1} parent=1 // pred_region
      _
    $region5: #{bike_classifier_forward.1} parent=1 // pred_fallthru
      _
    // Predicated region
    $region6: #{bike_classifier_forward.1} parent=1 // pred_check
      _
    $region7: #{bike_classifier_forward.1} parent=1 // pred_check_branch
      %19 = sbr.rel (0) target = $region9
    $region8: #{bike_classifier_forward.1} parent=1 // pred_region
      %21 = vsyncadd [#allocation3], 0
      %s23 = sshll.u32 %s1, 4
      %s24 = int_to_ptr.vmem [resolvable:$true] %s23
      %26 = dma.vmem_to_smem %s24, 32, [#allocation2], [#allocation3]
    $region9: #{bike_classifier_forward.1} parent=1 // pred_fallthru
      _
    // Predicated region
    $region10: #{bike_classifier_forward.1} parent=1 // pred_check
      _
    $region11: #{bike_classifier_forward.1} parent=1 // pred_check_branch
      %28 = sbr.rel (0) target = $region13
    $region12: #{bike_classifier_forward.1} parent=1 // pred_region
      %30 = vsyncadd [#allocation5], 0
      %s32 = sshll.u32 %s2, 4
      %s33 = int_to_ptr.vmem [resolvable:$true] %s32
      %35 = dma.vmem_to_smem %s33, 16, [#allocation4], [#allocation5]
    $region13: #{bike_classifier_forward.1} parent=1 // pred_fallthru
      _
    // Predicated region
    $region14: #{bike_classifier_forward.1} parent=1 // pred_check
      _
    $region15: #{bike_classifier_forward.1} parent=1 // pred_check_branch
      %37 = sbr.rel (0) target = $region17
    $region16: #{bike_classifier_forward.1} parent=1 // pred_region
      %39 = vsyncadd [#allocation5], 0
      %s41 = sshll.u32 %s3, 4
      %s42 = int_to_ptr.vmem [resolvable:$true] %s41
      %44 = dma.vmem_to_smem %s42, 64, [#allocation6], [#allocation5]
    $region17: #{bike_classifier_forward.1} parent=1 // pred_fallthru
      _
    // Predicated region
    $region18: #{bike_classifier_forward.1} parent=1 // pred_check
      _
    $region19: #{bike_classifier_forward.1} parent=1 // pred_check_branch
      %46 = sbr.rel (0) target = $region21
    $region20: #{bike_classifier_forward.1} parent=1 // pred_region
      %48 = vsyncadd [#allocation8], 0
      %s50 = sshll.u32 %s4, 4
      %s51 = int_to_ptr.vmem [resolvable:$true] %s50
      %53 = dma.vmem_to_smem %s51, 16, [#allocation7], [#allocation8]
    $region21: #{bike_classifier_forward.1} parent=1 // pred_fallthru
      _
    // Predicated region
    $region22: #{bike_classifier_forward.1} parent=1 // pred_check
      _
    $region23: #{bike_classifier_forward.1} parent=1 // pred_check_branch
      %55 = sbr.rel (0) target = $region25
    $region24: #{bike_classifier_forward.1} parent=1 // pred_region
      %57 = vsyncadd [#allocation8], 0
      %s59 = sshll.u32 %s5, 4
      %s60 = int_to_ptr.vmem [resolvable:$true] %s59
      %62 = dma.vmem_to_smem %s60, 32, [#allocation9], [#allocation8]
    $region25: #{bike_classifier_forward.1} parent=1 // pred_fallthru
      _
    // Predicated region
    $region26: #{bike_classifier_forward.1} parent=1 // pred_check
      _
    $region27: #{bike_classifier_forward.1} parent=1 // pred_check_branch
      %64 = sbr.rel (0) target = $region29
    $region28: #{bike_classifier_forward.1} parent=1 // pred_region
      %66 = vsyncadd [#allocation11], 0
      %s68 = sshll.u32 %s6, 4
      %s69 = int_to_ptr.vmem [resolvable:$true] %s68
      %71 = dma.vmem_to_smem %s69, 16, [#allocation10], [#allocation11]
    $region29: #{bike_classifier_forward.1} parent=1 // pred_fallthru
      _
    // Predicated region
    $region30: #{bike_classifier_forward.1} parent=1 // pred_check
      _
    $region31: #{bike_classifier_forward.1} parent=1 // pred_check_branch
      %73 = sbr.rel (0) target = $region33
    $region32: #{bike_classifier_forward.1} parent=1 // pred_region
      %75 = dma.done [#allocation3], 32
    $region33: #{bike_classifier_forward.1} parent=1 // pred_fallthru
      _
    // Predicated region
    $region34: #{bike_classifier_forward.1} parent=1 // pred_check
      _
    $region35: #{bike_classifier_forward.1} parent=1 // pred_check_branch
      %77 = sbr.rel (0) target = $region37
    $region36: #{bike_classifier_forward.1} parent=1 // pred_region
      %79 = dma.done [#allocation5], 16
    $region37: #{bike_classifier_forward.1} parent=1 // pred_fallthru
      _
    // Predicated region
    $region38: #{bike_classifier_forward.1} parent=1 // pred_check
      _
    $region39: #{bike_classifier_forward.1} parent=1 // pred_check_branch
      %81 = sbr.rel (0) target = $region41
    $region40: #{bike_classifier_forward.1} parent=1 // pred_region
      %83 = dma.done [#allocation5], 64
    $region41: #{bike_classifier_forward.1} parent=1 // pred_fallthru
      _
    // Predicated region
    $region42: #{bike_classifier_forward.1} parent=1 // pred_check
      _
    $region43: #{bike_classifier_forward.1} parent=1 // pred_check_branch
      %85 = sbr.rel (0) target = $region45
    $region44: #{bike_classifier_forward.1} parent=1 // pred_region
      %87 = dma.done [#allocation8], 16
    $region45: #{bike_classifier_forward.1} parent=1 // pred_fallthru
      _
    // Predicated region
    $region46: #{bike_classifier_forward.1} parent=1 // pred_check
      _
    $region47: #{bike_classifier_forward.1} parent=1 // pred_check_branch
      %89 = sbr.rel (0) target = $region49
    $region48: #{bike_classifier_forward.1} parent=1 // pred_region
      %91 = dma.done [#allocation8], 32
    $region49: #{bike_classifier_forward.1} parent=1 // pred_fallthru
      _
    // Predicated region
    $region50: #{bike_classifier_forward.1} parent=1 // pred_check
      _
    $region51: #{bike_classifier_forward.1} parent=1 // pred_check_branch
      %93 = sbr.rel (0) target = $region53
    $region52: #{bike_classifier_forward.1} parent=1 // pred_region
      %95 = dma.done [#allocation11], 16
    $region53: #{bike_classifier_forward.1} parent=1 // pred_fallthru
      _
    %96 = sfence
    %v97 = vld [vmem:[%s0] sm:$0xff]
    %s98 = scalar_lea.vmem %s0, 8
    %v99 = vld [vmem:[%s98] sm:$0xff]
    %s100 = scalar_lea.vmem %s0, 16
    %v101 = vld [vmem:[%s100] sm:$0xff]
    %s102 = sld [smem:[#allocation2]]
    %v103 = vstv %s102
    %v104 = vmul.f32 %v103, %v97
    %s105 = sld [smem:[#allocation2 + $0x1]]
    %v106 = vstv %s105
    %v107 = vmul.f32 %v106, %v99
    %v108 = vadd.f32 %v104, %v107
    %s109 = sld [smem:[#allocation2 + $0x2]]
    %v110 = vstv %s109
    %v111 = vmul.f32 %v110, %v101
    %v112 = vadd.f32 %v108, %v111
    %s113 = sld [smem:[#allocation4]]
    %v114 = vstv %s113
    %v115 = vadd.f32 %v112, %v114
    %v116 = vmax.f32 %v115, 0.0
    %s117 = sld [smem:[#allocation2 + $0x80]]
    %v118 = vstv %s117
    %v119 = vmul.f32 %v118, %v97
    %s120 = sld [smem:[#allocation2 + $0x81]]
    %v121 = vstv %s120
    %v122 = vmul.f32 %v121, %v99
    %v123 = vadd.f32 %v119, %v122
    %s124 = sld [smem:[#allocation2 + $0x82]]
    %v125 = vstv %s124
    %v126 = vmul.f32 %v125, %v101
    %v127 = vadd.f32 %v123, %v126
    %s128 = sld [smem:[#allocation4 + $0x1]]
    %v129 = vstv %s128
    %v130 = vadd.f32 %v127, %v129
    %v131 = vmax.f32 %v130, 0.0
    %s132 = sld [smem:[#allocation6]]
    %v133 = vstv %s132
    %v134 = vmul.f32 %v133, %v116
    %s135 = sld [smem:[#allocation6 + $0x1]]
    %v136 = vstv %s135
    %v137 = vmul.f32 %v136, %v131
    %v138 = vadd.f32 %v134, %v137
    %s139 = sld [smem:[#allocation7]]
    %v140 = vstv %s139
    %v141 = vadd.f32 %v138, %v140
    %v142 = vmax.f32 %v141, 0.0
    %s143 = sld [smem:[#allocation6 + $0x80]]
    %v144 = vstv %s143
    %v145 = vmul.f32 %v144, %v116
    %s146 = sld [smem:[#allocation6 + $0x81]]
    %v147 = vstv %s146
    %v148 = vmul.f32 %v147, %v131
    %v149 = vadd.f32 %v145, %v148
    %s150 = sld [smem:[#allocation7 + $0x1]]
    %v151 = vstv %s150
    %v152 = vadd.f32 %v149, %v151
    %v153 = vmax.f32 %v152, 0.0
    %s154 = sld [smem:[#allocation6 + $0x100]]
    %v155 = vstv %s154
    %v156 = vmul.f32 %v155, %v116
    %s157 = sld [smem:[#allocation6 + $0x101]]
    %v158 = vstv %s157
    %v159 = vmul.f32 %v158, %v131
    %v160 = vadd.f32 %v156, %v159
    %s161 = sld [smem:[#allocation7 + $0x2]]
    %v162 = vstv %s161
    %v163 = vadd.f32 %v160, %v162
    %v164 = vmax.f32 %v163, 0.0
    %s165 = sld [smem:[#allocation9]]
    %v166 = vstv %s165
    %v167 = vmul.f32 %v166, %v142
    %s168 = sld [smem:[#allocation9 + $0x1]]
    %v169 = vstv %s168
    %v170 = vmul.f32 %v169, %v153
    %v171 = vadd.f32 %v167, %v170
    %s172 = sld [smem:[#allocation9 + $0x2]]
    %v173 = vstv %s172
    %v174 = vmul.f32 %v173, %v164
    %v175 = vadd.f32 %v171, %v174
    %s176 = sld [smem:[#allocation10]]
    %v177 = vstv %s176
    %v178 = vadd.f32 %v175, %v177
    %179 = vst [vmem:[%s7] sm:$0xff] %v178
    %s180 = sld [smem:[#allocation9 + $0x80]]
    %v181 = vstv %s180
    %v182 = vmul.f32 %v181, %v142
    %s183 = sld [smem:[#allocation9 + $0x81]]
    %v184 = vstv %s183
    %v185 = vmul.f32 %v184, %v153
    %v186 = vadd.f32 %v182, %v185
    %s187 = sld [smem:[#allocation9 + $0x82]]
    %v188 = vstv %s187
    %v189 = vmul.f32 %v188, %v164
    %v190 = vadd.f32 %v186, %v189
    %s191 = sld [smem:[#allocation10 + $0x1]]
    %v192 = vstv %s191
    %v193 = vadd.f32 %v190, %v192
    %s194 = scalar_lea.vmem %s7, 8
    %195 = vst [vmem:[%s194] sm:$0xff] %v193
    // Predicated region
    $region54: #{bike_classifier_forward.1} parent=1 // pred_check
      _
    $region55: #{bike_classifier_forward.1} parent=1 // pred_check_branch
      %197 = sbr.rel (0) target = $region57
    $region56: #{bike_classifier_forward.1} parent=1 // pred_region
      _
    $region57: #{bike_classifier_forward.1} parent=1 // pred_fallthru
      _
    // Predicated region
    $region58: #{bike_classifier_forward.1} parent=1 // pred_check
      _
    $region59: #{bike_classifier_forward.1} parent=1 // pred_check_branch
      %199 = sbr.rel (0) target = $region61
    $region60: #{bike_classifier_forward.1} parent=1 // pred_region
      _
    $region61: #{bike_classifier_forward.1} parent=1 // pred_fallthru
      _
    %200 = vsyncpa [#allocation3], 1
    %201 = vsyncpa [#allocation5], 1
    %202 = vsyncpa [#allocation8], 1
    %203 = vsyncpa [#allocation11], 1

</llo_original>
